<compile_context>
chip_gen: v7x
topology: tpu7x:2x2x1
jax: 0.10.0
libtpu: 0.0.40
codegen_flags: <defaults>
</compile_context>

<pallas_src>
import jax
import jax.numpy as jnp
from jax.experimental import pallas as pl
from jax.experimental.pallas import tpu as pltpu


def _round_up(v, m):
    return (v + m - 1) // m * m


def _graph_merfish_kernel(x_ref, batch_ref, inv_ref,
                          w1_ref, b1_ref, w2_ref, b2_ref,
                          wh1_ref, bh1_ref, wh2_ref, bh2_ref,
                          out_ref, sums_ref):
    i = pl.program_id(0)
    tn = x_ref.shape[0]
    g_pad = sums_ref.shape[0]

    @pl.when(i == 0)
    def _():
        sums_ref[...] = jnp.zeros_like(sums_ref)

    # --- pretrained-model surrogate: node MLP encoder -> z [TN, H_pad] ---
    h = jnp.maximum(
        jnp.dot(x_ref[...], w1_ref[...], preferred_element_type=jnp.float32)
        + b1_ref[...], 0.0)
    z = jnp.dot(h, w2_ref[...], preferred_element_type=jnp.float32) + b2_ref[...]

    # --- segment-sum pooling into resident VMEM accumulator [G_pad, H_pad] ---
    # one-hot built in-kernel from int32 graph ids; padded nodes carry an
    # out-of-range id so they contribute nothing.
    gids = jax.lax.broadcasted_iota(jnp.int32, (tn, g_pad), 1)
    onehot = (batch_ref[...] == gids).astype(jnp.float32)          # [TN, G_pad]
    sums_ref[...] += jax.lax.dot_general(
        onehot, z,
        dimension_numbers=(((0,), (0,)), ((), ())),
        preferred_element_type=jnp.float32)                        # [G_pad, H_pad]

    # --- finalize on the last node tile: mean + MLP head -> [G_pad, C_pad] ---
    @pl.when(i == pl.num_programs(0) - 1)
    def _():
        pooled = sums_ref[...] * inv_ref[...]                      # mean pool
        hh = jnp.maximum(
            jnp.dot(pooled, wh1_ref[...], preferred_element_type=jnp.float32)
            + bh1_ref[...], 0.0)
        out_ref[...] = (jnp.dot(hh, wh2_ref[...],
                                preferred_element_type=jnp.float32)
                        + bh2_ref[...])


def graph_merfish_with_mlp(x, batch, num_graphs, params, *, tn=256):
    """x: [N, F] node features, batch: [N] int32 graph-ids in [0, num_graphs)."""
    N, F = x.shape
    G = num_graphs
    w1, b1, w2, b2, wh1, bh1, wh2, bh2 = params
    H = w1.shape[1]
    HH = wh1.shape[1]
    C = wh2.shape[1]

    # Lane/sublane-aligned padded dims (pads are zeros -> numerics unchanged).
    F_pad = _round_up(F, 128)
    H_pad = _round_up(H, 128)
    HH_pad = _round_up(HH, 128)
    C_pad = _round_up(C, 128)
    G_pad = _round_up(G, 8)

    tn = _round_up(min(tn, _round_up(N, 8)), 8)
    N_pad = _round_up(N, tn)
    num_tiles = N_pad // tn

    f32 = jnp.float32
    xp = jnp.zeros((N_pad, F_pad), f32).at[:N, :F].set(x.astype(f32))
    # Padded nodes get id == G_pad (matches no graph).
    bp = jnp.full((N_pad, 1), G_pad, jnp.int32).at[:N, 0].set(batch.astype(jnp.int32))

    def pad2(a, r, c):
        return jnp.zeros((r, c), f32).at[:a.shape[0], :a.shape[1]].set(a.astype(f32))

    w1p, b1p = pad2(w1, F_pad, H_pad), pad2(b1, 1, H_pad)
    w2p, b2p = pad2(w2, H_pad, H_pad), pad2(b2, 1, H_pad)
    wh1p, bh1p = pad2(wh1, H_pad, HH_pad), pad2(bh1, 1, HH_pad)
    wh2p, bh2p = pad2(wh2, HH_pad, C_pad), pad2(bh2, 1, C_pad)

    # Per-graph 1/count (tiny [G_pad, 1] vector; count clamped to >= 1).
    counts = jnp.maximum(jnp.bincount(batch.astype(jnp.int32), length=G).astype(f32), 1.0)
    inv = jnp.zeros((G_pad, 1), f32).at[:G, 0].set(1.0 / counts)

    const2 = lambda shape: pl.BlockSpec(shape, lambda i: (0, 0))
    in_specs = [
        pl.BlockSpec((tn, F_pad), lambda i: (i, 0)),   # x node tiles (streamed)
        pl.BlockSpec((tn, 1), lambda i: (i, 0)),       # batch id tiles (streamed)
        const2((G_pad, 1)),                            # 1/count (resident)
        const2((F_pad, H_pad)), const2((1, H_pad)),    # encoder L1 (resident)
        const2((H_pad, H_pad)), const2((1, H_pad)),    # encoder L2 (resident)
        const2((H_pad, HH_pad)), const2((1, HH_pad)),  # head L1 (resident)
        const2((HH_pad, C_pad)), const2((1, C_pad)),   # head L2 (resident)
    ]
    out_specs = pl.BlockSpec((G_pad, C_pad), lambda i: (0, 0))

    # Right-size scoped VMEM: resident weights + double-buffered node tiles +
    # accumulator/out + in-flight temporaries, with 2x headroom.
    bts = 4
    weight_bytes = bts * (F_pad * H_pad + H_pad + H_pad * H_pad + H_pad
                          + H_pad * HH_pad + HH_pad + HH_pad * C_pad + C_pad + G_pad)
    stream_bytes = 2 * bts * (tn * F_pad + tn)
    resident_bytes = bts * (G_pad * H_pad + G_pad * C_pad)
    work_bytes = bts * (2 * tn * H_pad + tn * G_pad)
    vmem_limit = int(min(100 * 1024 * 1024,
                         max(4 * 1024 * 1024,
                             2 * (weight_bytes + stream_bytes + resident_bytes + work_bytes))))

    flops = (2 * N_pad * F_pad * H_pad + 2 * N_pad * H_pad * H_pad
             + 2 * N_pad * G_pad * H_pad + 2 * G_pad * H_pad * HH_pad
             + 2 * G_pad * HH_pad * C_pad)
    bytes_accessed = bts * (xp.size + bp.size + inv.size) + weight_bytes + bts * G_pad * C_pad
    cost = pl.CostEstimate(flops=flops, transcendentals=0, bytes_accessed=int(bytes_accessed))

    out = pl.pallas_call(
        _graph_merfish_kernel,
        out_shape=jax.ShapeDtypeStruct((G_pad, C_pad), f32),
        grid_spec=pltpu.PrefetchScalarGridSpec(
            num_scalar_prefetch=0,
            grid=(num_tiles,),
            in_specs=in_specs,
            out_specs=out_specs,
            scratch_shapes=[pltpu.VMEM((G_pad, H_pad), f32)],
        ),
        compiler_params=pltpu.CompilerParams(
            dimension_semantics=("arbitrary",),   # N axis is a reduction
            vmem_limit_bytes=vmem_limit,
        ),
        cost_estimate=cost,
    )(xp, bp, inv, w1p, b1p, w2p, b2p, wh1p, bh1p, wh2p, bh2p)

    return out[:G, :C]


def _reference(x, batch, num_graphs, params):
    w1, b1, w2, b2, wh1, bh1, wh2, bh2 = params
    h = jnp.maximum(x @ w1 + b1, 0.0)
    z = h @ w2 + b2
    one_hot = (batch[None, :] == jnp.arange(num_graphs, dtype=batch.dtype)[:, None]).astype(jnp.float32)
    counts = jnp.maximum(one_hot.sum(axis=1, keepdims=True), 1.0)
    pooled = (one_hot / counts) @ z
    hh = jnp.maximum(pooled @ wh1 + bh1, 0.0)
    return hh @ wh2 + bh2


if __name__ == "__main__":
    # Small, deterministic shapes.
    N = 64          # total nodes across graphs
    F = 16          # input node feature dim
    H = 32          # node embedding dim (z)
    G = 4           # number of graphs in the batch
    C = 8           # mlp_head output classes
    HH = 32         # mlp_head hidden dim

    key = jax.random.PRNGKey(0)
    ks = jax.random.split(key, 9)

    x = jax.random.normal(ks[0], (N, F), dtype=jnp.float32)
    # Sorted, ragged graph assignment (PyG-style batch vector); sizes chosen so
    # one graph straddles a node-tile boundary to exercise cross-tile pooling.
    sizes = [20, 14, 14, 16]
    batch = jnp.concatenate(
        [jnp.full((s,), g, jnp.int32) for g, s in enumerate(sizes)])

    def init(k, shape, fan_in):
        return (jax.random.normal(k, shape, dtype=jnp.float32) / jnp.sqrt(fan_in)).astype(jnp.float32)

    params = (
        init(ks[1], (F, H), F),   jnp.zeros((1, H), jnp.float32),   # encoder layer 1
        init(ks[2], (H, H), H),   jnp.zeros((1, H), jnp.float32),   # encoder layer 2 -> z
        init(ks[3], (H, HH), H),  jnp.zeros((1, HH), jnp.float32),  # mlp_head layer 1
        init(ks[4], (HH, C), HH), jnp.zeros((1, C), jnp.float32),   # mlp_head layer 2
    )

    out = graph_merfish_with_mlp(x, batch, G, params, tn=32)  # 2 node tiles
    out = jax.block_until_ready(out)

    ref = _reference(x, batch, G, params)
    assert out.shape == (G, C)
    assert jnp.allclose(out, ref, atol=1e-5, rtol=1e-5), "mismatch vs reference"

    print("KERNEL_OK")
</pallas_src>

<mosaic_0001>
module attributes {stable_mosaic.version = 11 : i64} {
  func.func @_graph_merfish_kernel(%arg0: i32, %arg1: memref<32x128xf32, #tpu.memory_space<vmem>>, %arg2: memref<32x1xi32, #tpu.memory_space<vmem>>, %arg3: memref<8x1xf32, #tpu.memory_space<vmem>>, %arg4: memref<128x128xf32, #tpu.memory_space<vmem>>, %arg5: memref<1x128xf32, #tpu.memory_space<vmem>>, %arg6: memref<128x128xf32, #tpu.memory_space<vmem>>, %arg7: memref<1x128xf32, #tpu.memory_space<vmem>>, %arg8: memref<128x128xf32, #tpu.memory_space<vmem>>, %arg9: memref<1x128xf32, #tpu.memory_space<vmem>>, %arg10: memref<128x128xf32, #tpu.memory_space<vmem>>, %arg11: memref<1x128xf32, #tpu.memory_space<vmem>>, %arg12: memref<8x128xf32, #tpu.memory_space<vmem>>, %arg13: memref<8x128xf32, #tpu.memory_space<vmem>>) attributes {dimension_semantics = [#tpu.dimension_semantics<arbitrary>], iteration_bounds = array<i64: 2>, scalar_prefetch = 0 : i64, scratch_operands = 1 : i64, tpu.core_type = #tpu.core_type<tc>, window_params = [{transform_indices = @transform_0, window_bounds = array<i64: 32, 128>}, {transform_indices = @transform_1, window_bounds = array<i64: 32, 1>}, {pipeline_mode = #tpu.pipeline_mode<synchronous>, transform_indices = @transform_2, window_bounds = array<i64: 8, 1>}, {pipeline_mode = #tpu.pipeline_mode<synchronous>, transform_indices = @transform_3, window_bounds = array<i64: 128, 128>}, {pipeline_mode = #tpu.pipeline_mode<synchronous>, transform_indices = @transform_4, window_bounds = array<i64: 1, 128>}, {pipeline_mode = #tpu.pipeline_mode<synchronous>, transform_indices = @transform_5, window_bounds = array<i64: 128, 128>}, {pipeline_mode = #tpu.pipeline_mode<synchronous>, transform_indices = @transform_6, window_bounds = array<i64: 1, 128>}, {pipeline_mode = #tpu.pipeline_mode<synchronous>, transform_indices = @transform_7, window_bounds = array<i64: 128, 128>}, {pipeline_mode = #tpu.pipeline_mode<synchronous>, transform_indices = @transform_8, window_bounds = array<i64: 1, 128>}, {pipeline_mode = #tpu.pipeline_mode<synchronous>, transform_indices = @transform_9, window_bounds = array<i64: 128, 128>}, {pipeline_mode = #tpu.pipeline_mode<synchronous>, transform_indices = @transform_10, window_bounds = array<i64: 1, 128>}, {pipeline_mode = #tpu.pipeline_mode<synchronous>, transform_indices = @transform_11, window_bounds = array<i64: 8, 128>}]} {
    %c0_i32 = arith.constant 0 : i32
    %0 = arith.cmpi eq, %arg0, %c0_i32 : i32
    %1 = arith.extui %0 : i1 to i32
    %c0_i32_0 = arith.constant 0 : i32
    %2 = arith.cmpi ne, %1, %c0_i32_0 : i32
    scf.if %2 {
      %cst_20 = arith.constant 0.000000e+00 : f32
      %29 = vector.broadcast %cst_20 : f32 to vector<8x128xf32>
      %c0_21 = arith.constant 0 : index
      %c0_22 = arith.constant 0 : index
      %30 = vector.load %arg13[%c0_21, %c0_22] : memref<8x128xf32, #tpu.memory_space<vmem>>, vector<8x128xf32>
      tpu.vector_store %arg13[%c0_21, %c0_22], %29 {strides = array<i32>} : memref<8x128xf32, #tpu.memory_space<vmem>>, vector<8x128xf32>,
    } else {
    }
    %c0 = arith.constant 0 : index
    %c0_1 = arith.constant 0 : index
    %3 = vector.load %arg1[%c0, %c0_1] : memref<32x128xf32, #tpu.memory_space<vmem>>, vector<32x128xf32>
    %c0_2 = arith.constant 0 : index
    %c0_3 = arith.constant 0 : index
    %4 = vector.load %arg4[%c0_2, %c0_3] : memref<128x128xf32, #tpu.memory_space<vmem>>, vector<128x128xf32>
    %cst = arith.constant dense<0.000000e+00> : vector<32x128xf32>
    %5 = tpu.matmul %3, %4, %cst {dimension_numbers = #tpu.dot_dimension_numbers<[1], [0], [0], [1], [0, 0, 1, 1], [], []>} : vector<32x128xf32>, vector<128x128xf32>, vector<32x128xf32> -> vector<32x128xf32>
    %c0_4 = arith.constant 0 : index
    %c0_5 = arith.constant 0 : index
    %6 = vector.load %arg5[%c0_4, %c0_5] : memref<1x128xf32, #tpu.memory_space<vmem>>, vector<1x128xf32>
    %7 = vector.broadcast %6 : vector<1x128xf32> to vector<32x128xf32>
    %8 = arith.addf %5, %7 : vector<32x128xf32>
    %cst_6 = arith.constant 0.000000e+00 : f32
    %9 = vector.broadcast %cst_6 : f32 to vector<32x128xf32>
    %10 = arith.maximumf %8, %9 : vector<32x128xf32>
    %c0_7 = arith.constant 0 : index
    %c0_8 = arith.constant 0 : index
    %11 = vector.load %arg6[%c0_7, %c0_8] : memref<128x128xf32, #tpu.memory_space<vmem>>, vector<128x128xf32>
    %cst_9 = arith.constant dense<0.000000e+00> : vector<32x128xf32>
    %12 = tpu.matmul %10, %11, %cst_9 {dimension_numbers = #tpu.dot_dimension_numbers<[1], [0], [0], [1], [0, 0, 1, 1], [], []>} : vector<32x128xf32>, vector<128x128xf32>, vector<32x128xf32> -> vector<32x128xf32>
    %c0_10 = arith.constant 0 : index
    %c0_11 = arith.constant 0 : index
    %13 = vector.load %arg7[%c0_10, %c0_11] : memref<1x128xf32, #tpu.memory_space<vmem>>, vector<1x128xf32>
    %14 = vector.broadcast %13 : vector<1x128xf32> to vector<32x128xf32>
    %15 = arith.addf %12, %14 : vector<32x128xf32>
    %16 = tpu.iota {dimensions = array<i32: 1>} : vector<32x8xi32>
    %c0_12 = arith.constant 0 : index
    %c0_13 = arith.constant 0 : index
    %17 = vector.load %arg2[%c0_12, %c0_13] : memref<32x1xi32, #tpu.memory_space<vmem>>, vector<32x1xi32>
    %18 = vector.broadcast %17 : vector<32x1xi32> to vector<32x8xi32>
    %19 = arith.cmpi eq, %18, %16 : vector<32x8xi32>
    %20 = arith.extui %19 : vector<32x8xi1> to vector<32x8xi32>
    %21 = arith.sitofp %20 : vector<32x8xi32> to vector<32x8xf32>
    %c0_14 = arith.constant 0 : index
    %c0_15 = arith.constant 0 : index
    %22 = vector.load %arg13[%c0_14, %c0_15] : memref<8x128xf32, #tpu.memory_space<vmem>>, vector<8x128xf32>
    %cst_16 = arith.constant dense<0.000000e+00> : vector<8x128xf32>
    %23 = tpu.matmul %21, %15, %cst_16 {dimension_numbers = #tpu.dot_dimension_numbers<[0], [0], [1], [1], [0, 1, 1, 1], [], []>} : vector<32x8xf32>, vector<32x128xf32>, vector<8x128xf32> -> vector<8x128xf32>
    %24 = arith.addf %22, %23 : vector<8x128xf32>
    %c0_17 = arith.constant 0 : index
    %c0_18 = arith.constant 0 : index
    %25 = vector.load %arg13[%c0_17, %c0_18] : memref<8x128xf32, #tpu.memory_space<vmem>>, vector<8x128xf32>
    tpu.vector_store %arg13[%c0_17, %c0_18], %24 {strides = array<i32>} : memref<8x128xf32, #tpu.memory_space<vmem>>, vector<8x128xf32>,
    %c1_i32 = arith.constant 1 : i32
    %26 = arith.cmpi eq, %arg0, %c1_i32 : i32
    %27 = arith.extui %26 : i1 to i32
    %c0_i32_19 = arith.constant 0 : i32
    %28 = arith.cmpi ne, %27, %c0_i32_19 : i32
    scf.if %28 {
      %c0_20 = arith.constant 0 : index
      %c0_21 = arith.constant 0 : index
      %29 = vector.load %arg13[%c0_20, %c0_21] : memref<8x128xf32, #tpu.memory_space<vmem>>, vector<8x128xf32>
      %c0_22 = arith.constant 0 : index
      %c0_23 = arith.constant 0 : index
      %30 = vector.load %arg3[%c0_22, %c0_23] : memref<8x1xf32, #tpu.memory_space<vmem>>, vector<8x1xf32>
      %31 = vector.broadcast %30 : vector<8x1xf32> to vector<8x128xf32>
      %32 = arith.mulf %29, %31 : vector<8x128xf32>
      %c0_24 = arith.constant 0 : index
      %c0_25 = arith.constant 0 : index
      %33 = vector.load %arg8[%c0_24, %c0_25] : memref<128x128xf32, #tpu.memory_space<vmem>>, vector<128x128xf32>
      %cst_26 = arith.constant dense<0.000000e+00> : vector<8x128xf32>
      %34 = tpu.matmul %32, %33, %cst_26 {dimension_numbers = #tpu.dot_dimension_numbers<[1], [0], [0], [1], [0, 0, 1, 1], [], []>} : vector<8x128xf32>, vector<128x128xf32>, vector<8x128xf32> -> vector<8x128xf32>
      %c0_27 = arith.constant 0 : index
      %c0_28 = arith.constant 0 : index
      %35 = vector.load %arg9[%c0_27, %c0_28] : memref<1x128xf32, #tpu.memory_space<vmem>>, vector<1x128xf32>
      %36 = vector.broadcast %35 : vector<1x128xf32> to vector<8x128xf32>
      %37 = arith.addf %34, %36 : vector<8x128xf32>
      %cst_29 = arith.constant 0.000000e+00 : f32
      %38 = vector.broadcast %cst_29 : f32 to vector<8x128xf32>
      %39 = arith.maximumf %37, %38 : vector<8x128xf32>
      %c0_30 = arith.constant 0 : index
      %c0_31 = arith.constant 0 : index
      %40 = vector.load %arg10[%c0_30, %c0_31] : memref<128x128xf32, #tpu.memory_space<vmem>>, vector<128x128xf32>
      %cst_32 = arith.constant dense<0.000000e+00> : vector<8x128xf32>
      %41 = tpu.matmul %39, %40, %cst_32 {dimension_numbers = #tpu.dot_dimension_numbers<[1], [0], [0], [1], [0, 0, 1, 1], [], []>} : vector<8x128xf32>, vector<128x128xf32>, vector<8x128xf32> -> vector<8x128xf32>
      %c0_33 = arith.constant 0 : index
      %c0_34 = arith.constant 0 : index
      %42 = vector.load %arg11[%c0_33, %c0_34] : memref<1x128xf32, #tpu.memory_space<vmem>>, vector<1x128xf32>
      %43 = vector.broadcast %42 : vector<1x128xf32> to vector<8x128xf32>
      %44 = arith.addf %41, %43 : vector<8x128xf32>
      %c0_35 = arith.constant 0 : index
      %c0_36 = arith.constant 0 : index
      %45 = vector.load %arg12[%c0_35, %c0_36] : memref<8x128xf32, #tpu.memory_space<vmem>>, vector<8x128xf32>
      tpu.vector_store %arg12[%c0_35, %c0_36], %44 {strides = array<i32>} : memref<8x128xf32, #tpu.memory_space<vmem>>, vector<8x128xf32>,
    } else {
    }
    return
  }
  func.func @transform_0(%arg0: i32) -> (i32, i32) {
    %c0_i32 = arith.constant 0 : i32
    %c0_i32_0 = arith.constant 0 : i32
    return %arg0, %c0_i32 : i32, i32
  }
  func.func @transform_1(%arg0: i32) -> (i32, i32) {
    %c0_i32 = arith.constant 0 : i32
    %c0_i32_0 = arith.constant 0 : i32
    return %arg0, %c0_i32 : i32, i32
  }
  func.func @transform_2(%arg0: i32) -> (i32, i32) {
    %c0_i32 = arith.constant 0 : i32
    %c0_i32_0 = arith.constant 0 : i32
    %c0_i32_1 = arith.constant 0 : i32
    return %c0_i32, %c0_i32_0 : i32, i32
  }
  func.func @transform_3(%arg0: i32) -> (i32, i32) {
    %c0_i32 = arith.constant 0 : i32
    %c0_i32_0 = arith.constant 0 : i32
    %c0_i32_1 = arith.constant 0 : i32
    return %c0_i32, %c0_i32_0 : i32, i32
  }
  func.func @transform_4(%arg0: i32) -> (i32, i32) {
    %c0_i32 = arith.constant 0 : i32
    %c0_i32_0 = arith.constant 0 : i32
    %c0_i32_1 = arith.constant 0 : i32
    return %c0_i32, %c0_i32_0 : i32, i32
  }
  func.func @transform_5(%arg0: i32) -> (i32, i32) {
    %c0_i32 = arith.constant 0 : i32
    %c0_i32_0 = arith.constant 0 : i32
    %c0_i32_1 = arith.constant 0 : i32
    return %c0_i32, %c0_i32_0 : i32, i32
  }
  func.func @transform_6(%arg0: i32) -> (i32, i32) {
    %c0_i32 = arith.constant 0 : i32
    %c0_i32_0 = arith.constant 0 : i32
    %c0_i32_1 = arith.constant 0 : i32
    return %c0_i32, %c0_i32_0 : i32, i32
  }
  func.func @transform_7(%arg0: i32) -> (i32, i32) {
    %c0_i32 = arith.constant 0 : i32
    %c0_i32_0 = arith.constant 0 : i32
    %c0_i32_1 = arith.constant 0 : i32
    return %c0_i32, %c0_i32_0 : i32, i32
  }
  func.func @transform_8(%arg0: i32) -> (i32, i32) {
    %c0_i32 = arith.constant 0 : i32
    %c0_i32_0 = arith.constant 0 : i32
    %c0_i32_1 = arith.constant 0 : i32
    return %c0_i32, %c0_i32_0 : i32, i32
  }
  func.func @transform_9(%arg0: i32) -> (i32, i32) {
    %c0_i32 = arith.constant 0 : i32
    %c0_i32_0 = arith.constant 0 : i32
    %c0_i32_1 = arith.constant 0 : i32
    return %c0_i32, %c0_i32_0 : i32, i32
  }
  func.func @transform_10(%arg0: i32) -> (i32, i32) {
    %c0_i32 = arith.constant 0 : i32
    %c0_i32_0 = arith.constant 0 : i32
    %c0_i32_1 = arith.constant 0 : i32
    return %c0_i32, %c0_i32_0 : i32, i32
  }
  func.func @transform_11(%arg0: i32) -> (i32, i32) {
    %c0_i32 = arith.constant 0 : i32
    %c0_i32_0 = arith.constant 0 : i32
    %c0_i32_1 = arith.constant 0 : i32
    return %c0_i32, %c0_i32_0 : i32, i32
  }
}

</mosaic_0001>

<llo_original>
// kernel: tpu_custom_call.1
$region0: #{tpu_custom_call.1}
  #allocation0 [shape = 'u32[]', space=smem, size = 0x4, offset = 0x4, fixed_abs, tag = 'smem constant byte address 0x4 - core index']
  #allocation1 [shape = 'u32[144,128]{1,0:T(1,128)}', space=vmem, size = 0x12000, scoped, tag = 'internal scratch']
  #allocation2 [shape = 'f32[8,128]{1,0:T(8,128)}', space=vmem, size = 0x1000, scoped, tag = 'scratch operand']
  %s0 = inlined_call_operand.vmem [shape: f32[64,128], index: 0, kind: input, shape index: {}]
  %s1 = inlined_call_operand.vmem [shape: s32[64,1], index: 1, kind: input, shape index: {}]
  %s2 = inlined_call_operand.vmem [shape: f32[8,1], index: 2, kind: input, shape index: {}]
  %s3 = inlined_call_operand.hbm [shape: f32[128,128], index: 3, kind: input, shape index: {}]
  %s4 = inlined_call_operand.vmem [shape: f32[1,128], index: 4, kind: input, shape index: {}]
  %s5 = inlined_call_operand.hbm [shape: f32[128,128], index: 5, kind: input, shape index: {}]
  %s6 = inlined_call_operand.vmem [shape: f32[1,128], index: 6, kind: input, shape index: {}]
  %s7 = inlined_call_operand.hbm [shape: f32[128,128], index: 7, kind: input, shape index: {}]
  %s8 = inlined_call_operand.vmem [shape: f32[1,128], index: 8, kind: input, shape index: {}]
  %s9 = inlined_call_operand.hbm [shape: f32[128,128], index: 9, kind: input, shape index: {}]
  %s10 = inlined_call_operand.vmem [shape: f32[1,128], index: 10, kind: input, shape index: {}]
  %s11 = inlined_call_operand.hbm [shape: f32[8,128], index: 11, kind: output, shape index: {}]
  %s12 = sld [smem:[#allocation0]]
  $region101: #{tpu_custom_call.1} parent=0
    _
  %s14 = ssub.s32 1, %s12
  %s15 = scalar_select 0, %s14, %s12
  $region1: #{tpu_custom_call.1} parent=0
    #allocation3 [shape = 'u8[65536]{0}', space=vmem, size = 0x10000, scoped, tag = 'input window, operand 3, single buffered']
    #allocation4 [shape = 's32[2]{0}', space=sflag, size = 0x8, scoped, tag = 'scoped memory for tpu_custom_call.1']
    #allocation5 [shape = 's32[2]{0}', space=sflag, size = 0x8, scoped, tag = 'scoped memory for tpu_custom_call.1']
    #allocation6 [shape = 'u8[65536]{0}', space=vmem, size = 0x10000, scoped, tag = 'input window, operand 5, single buffered']
    #allocation7 [shape = 's32[1]{0}', space=sflag, size = 0x4, scoped, tag = 'scoped memory for tpu_custom_call.1']
    #allocation8 [shape = 'u8[65536]{0}', space=vmem, size = 0x10000, scoped, tag = 'input window, operand 7, single buffered']
    #allocation9 [shape = 'u8[65536]{0}', space=vmem, size = 0x10000, scoped, tag = 'input window, operand 9, single buffered']
    #allocation10 [shape = 's32[1]{0}', space=sflag, size = 0x4, scoped, tag = 'scoped memory for tpu_custom_call.1']
    #allocation11 [shape = 'u8[4096]{0}', space=vmem, size = 0x1000, scoped, tag = 'output window, operand 0, single buffered']
    %16 = vsyncpa [#allocation4], 0
    %17 = vsyncpa [#allocation7], 0
    %18 = vsyncpa [#allocation10], 0
    %19 = vsyncpa [#allocation5], 0
    loop: start=0, step=1, limit=4
    $region2: #{tpu_custom_call.1} parent=1 // loop_pre_header
      _
    $region3: #{tpu_custom_call.1} parent=1 // loop_header
      %s21 = sphi 0, %s25
      %p22 = scmp.ge.s32.totalorder %s21, 4
      %s31 = sphi 0, %s33
      %s34 = sphi 0, %s31
      %s35 = sphi 0, %s34
      %s51 = sphi 0, %s35
      %s57 = sphi 0, %s59
      %s60 = sphi 0, %s57
      %s61 = sphi 0, %s60
      %s77 = sphi 0, %s61
      %s81 = sphi 0, %s81
      %s83 = sphi 0, %s81
      %s84 = sphi 0, %s83
      %s98 = sphi 0, %s84
      %s102 = sphi 0, %s102
      %s104 = sphi 0, %s102
      %s105 = sphi 0, %s104
      %s119 = sphi 0, %s105
      %s123 = sphi 0, %s123
      %s125 = sphi 0, %s123
      %s126 = sphi 0, %s125
      %s140 = sphi 0, %s126
      %s144 = sphi 0, %s144
      %s146 = sphi 0, %s144
      %s147 = sphi 0, %s146
      %s161 = sphi 0, %s147
      %s165 = sphi 0, %s165
      %s167 = sphi 0, %s165
      %s168 = sphi 0, %s167
      %s182 = sphi 0, %s168
      %s186 = sphi 0, %s186
      %s188 = sphi 0, %s186
      %s189 = sphi 0, %s188
      %s203 = sphi 0, %s189
      %s207 = sphi 0, %s207
      %s209 = sphi 0, %s207
      %s210 = sphi 0, %s209
      %s224 = sphi 0, %s210
      %s228 = sphi 0, %s228
      %s230 = sphi 0, %s228
      %s231 = sphi 0, %s230
      %s245 = sphi 0, %s231
      %s249 = sphi 0, %s249
      %s251 = sphi 0, %s249
      %s252 = sphi 0, %s251
      %s266 = sphi 0, %s252
      %s270 = sphi 0, %s270
      %s272 = sphi 0, %s270
      %s273 = sphi 0, %s272
      %s287 = sphi 0, %s273
    $region4: #{tpu_custom_call.1} parent=1 // loop_header_branch
      %24 = sbr.rel (%p22) target = $region8
    $region5: #{tpu_custom_call.1} parent=1 // loop_body
      %s26 = ssub.s32 %s21, 1
      %s27 = ssub.s32 %s21, 2
      %s28 = sadd.s32 %s21, 1
      %s29 = ssub.s32 %s21, %s28
      %p30 = scmp.eq.s32.totalorder %s29, 0
      %s32 = sadd.s32 %s31, 1
      %s33 = scalar_select %p30, %s31, %s32
      %p36 = pneg %p30
      %p37 = scmp.eq.s32.totalorder %s21, 1
      %p38 = por %p36, %p37
      %p39 = scmp.ne.s32.totalorder %s31, %s34
      %p40 = scmp.eq.s32.totalorder %s21, 0
      %p41 = por %p39, %p40
      %p42 = scmp.ne.s32.totalorder %s31, %s34
      %p43 = scmp.eq.s32.totalorder %s26, 1
      %p44 = por %p42, %p43
      %p45 = scmp.ne.s32.totalorder %s34, %s35
      %p46 = scmp.eq.s32.totalorder %s26, 0
      %p47 = por %p45, %p46
      %p48 = scmp.ne.s32.totalorder %s34, %s35
      %p49 = scmp.eq.s32.totalorder %s27, 1
      %p50 = por %p48, %p49
      %p52 = scmp.ne.s32.totalorder %s35, %s51
      %p53 = scmp.eq.s32.totalorder %s27, 0
      %p54 = por %p52, %p53
      %s55 = ssub.s32 %s21, %s28
      %p56 = scmp.eq.s32.totalorder %s55, 0
      %s58 = sadd.s32 %s57, 1
      %s59 = scalar_select %p56, %s57, %s58
      %p62 = pneg %p56
      %p63 = scmp.eq.s32.totalorder %s21, 1
      %p64 = por %p62, %p63
      %p65 = scmp.ne.s32.totalorder %s57, %s60
      %p66 = scmp.eq.s32.totalorder %s21, 0
      %p67 = por %p65, %p66
      %p68 = scmp.ne.s32.totalorder %s57, %s60
      %p69 = scmp.eq.s32.totalorder %s26, 1
      %p70 = por %p68, %p69
      %p71 = scmp.ne.s32.totalorder %s60, %s61
      %p72 = scmp.eq.s32.totalorder %s26, 0
      %p73 = por %p71, %p72
      %p74 = scmp.ne.s32.totalorder %s60, %s61
      %p75 = scmp.eq.s32.totalorder %s27, 1
      %p76 = por %p74, %p75
      %p78 = scmp.ne.s32.totalorder %s61, %s77
      %p79 = scmp.eq.s32.totalorder %s27, 0
      %p80 = por %p78, %p79
      %s82 = sadd.s32 %s81, 1
      %p85 = scmp.eq.s32.totalorder %s21, 1
      %p86 = scmp.ne.s32.totalorder %s81, %s83
      %p87 = scmp.eq.s32.totalorder %s21, 0
      %p88 = por %p86, %p87
      %p89 = scmp.ne.s32.totalorder %s81, %s83
      %p90 = scmp.eq.s32.totalorder %s26, 1
      %p91 = por %p89, %p90
      %p92 = scmp.ne.s32.totalorder %s83, %s84
      %p93 = scmp.eq.s32.totalorder %s26, 0
      %p94 = por %p92, %p93
      %p95 = scmp.ne.s32.totalorder %s83, %s84
      %p96 = scmp.eq.s32.totalorder %s27, 1
      %p97 = por %p95, %p96
      %p99 = scmp.ne.s32.totalorder %s84, %s98
      %p100 = scmp.eq.s32.totalorder %s27, 0
      %p101 = por %p99, %p100
      %s103 = sadd.s32 %s102, 1
      %p106 = scmp.eq.s32.totalorder %s21, 1
      %p107 = scmp.ne.s32.totalorder %s102, %s104
      %p108 = scmp.eq.s32.totalorder %s21, 0
      %p109 = por %p107, %p108
      %p110 = scmp.ne.s32.totalorder %s102, %s104
      %p111 = scmp.eq.s32.totalorder %s26, 1
      %p112 = por %p110, %p111
      %p113 = scmp.ne.s32.totalorder %s104, %s105
      %p114 = scmp.eq.s32.totalorder %s26, 0
      %p115 = por %p113, %p114
      %p116 = scmp.ne.s32.totalorder %s104, %s105
      %p117 = scmp.eq.s32.totalorder %s27, 1
      %p118 = por %p116, %p117
      %p120 = scmp.ne.s32.totalorder %s105, %s119
      %p121 = scmp.eq.s32.totalorder %s27, 0
      %p122 = por %p120, %p121
      %s124 = sadd.s32 %s123, 1
      %p127 = scmp.eq.s32.totalorder %s21, 1
      %p128 = scmp.ne.s32.totalorder %s123, %s125
      %p129 = scmp.eq.s32.totalorder %s21, 0
      %p130 = por %p128, %p129
      %p131 = scmp.ne.s32.totalorder %s123, %s125
      %p132 = scmp.eq.s32.totalorder %s26, 1
      %p133 = por %p131, %p132
      %p134 = scmp.ne.s32.totalorder %s125, %s126
      %p135 = scmp.eq.s32.totalorder %s26, 0
      %p136 = por %p134, %p135
      %p137 = scmp.ne.s32.totalorder %s125, %s126
      %p138 = scmp.eq.s32.totalorder %s27, 1
      %p139 = por %p137, %p138
      %p141 = scmp.ne.s32.totalorder %s126, %s140
      %p142 = scmp.eq.s32.totalorder %s27, 0
      %p143 = por %p141, %p142
      %s145 = sadd.s32 %s144, 1
      %p148 = scmp.eq.s32.totalorder %s21, 1
      %p149 = scmp.ne.s32.totalorder %s144, %s146
      %p150 = scmp.eq.s32.totalorder %s21, 0
      %p151 = por %p149, %p150
      %p152 = scmp.ne.s32.totalorder %s144, %s146
      %p153 = scmp.eq.s32.totalorder %s26, 1
      %p154 = por %p152, %p153
      %p155 = scmp.ne.s32.totalorder %s146, %s147
      %p156 = scmp.eq.s32.totalorder %s26, 0
      %p157 = por %p155, %p156
      %p158 = scmp.ne.s32.totalorder %s146, %s147
      %p159 = scmp.eq.s32.totalorder %s27, 1
      %p160 = por %p158, %p159
      %p162 = scmp.ne.s32.totalorder %s147, %s161
      %p163 = scmp.eq.s32.totalorder %s27, 0
      %p164 = por %p162, %p163
      %s166 = sadd.s32 %s165, 1
      %p169 = scmp.eq.s32.totalorder %s21, 1
      %p170 = scmp.ne.s32.totalorder %s165, %s167
      %p171 = scmp.eq.s32.totalorder %s21, 0
      %p172 = por %p170, %p171
      %p173 = scmp.ne.s32.totalorder %s165, %s167
      %p174 = scmp.eq.s32.totalorder %s26, 1
      %p175 = por %p173, %p174
      %p176 = scmp.ne.s32.totalorder %s167, %s168
      %p177 = scmp.eq.s32.totalorder %s26, 0
      %p178 = por %p176, %p177
      %p179 = scmp.ne.s32.totalorder %s167, %s168
      %p180 = scmp.eq.s32.totalorder %s27, 1
      %p181 = por %p179, %p180
      %p183 = scmp.ne.s32.totalorder %s168, %s182
      %p184 = scmp.eq.s32.totalorder %s27, 0
      %p185 = por %p183, %p184
      %s187 = sadd.s32 %s186, 1
      %p190 = scmp.eq.s32.totalorder %s21, 1
      %p191 = scmp.ne.s32.totalorder %s186, %s188
      %p192 = scmp.eq.s32.totalorder %s21, 0
      %p193 = por %p191, %p192
      %p194 = scmp.ne.s32.totalorder %s186, %s188
      %p195 = scmp.eq.s32.totalorder %s26, 1
      %p196 = por %p194, %p195
      %p197 = scmp.ne.s32.totalorder %s188, %s189
      %p198 = scmp.eq.s32.totalorder %s26, 0
      %p199 = por %p197, %p198
      %p200 = scmp.ne.s32.totalorder %s188, %s189
      %p201 = scmp.eq.s32.totalorder %s27, 1
      %p202 = por %p200, %p201
      %p204 = scmp.ne.s32.totalorder %s189, %s203
      %p205 = scmp.eq.s32.totalorder %s27, 0
      %p206 = por %p204, %p205
      %s208 = sadd.s32 %s207, 1
      %p211 = scmp.eq.s32.totalorder %s21, 1
      %p212 = scmp.ne.s32.totalorder %s207, %s209
      %p213 = scmp.eq.s32.totalorder %s21, 0
      %p214 = por %p212, %p213
      %p215 = scmp.ne.s32.totalorder %s207, %s209
      %p216 = scmp.eq.s32.totalorder %s26, 1
      %p217 = por %p215, %p216
      %p218 = scmp.ne.s32.totalorder %s209, %s210
      %p219 = scmp.eq.s32.totalorder %s26, 0
      %p220 = por %p218, %p219
      %p221 = scmp.ne.s32.totalorder %s209, %s210
      %p222 = scmp.eq.s32.totalorder %s27, 1
      %p223 = por %p221, %p222
      %p225 = scmp.ne.s32.totalorder %s210, %s224
      %p226 = scmp.eq.s32.totalorder %s27, 0
      %p227 = por %p225, %p226
      %s229 = sadd.s32 %s228, 1
      %p232 = scmp.eq.s32.totalorder %s21, 1
      %p233 = scmp.ne.s32.totalorder %s228, %s230
      %p234 = scmp.eq.s32.totalorder %s21, 0
      %p235 = por %p233, %p234
      %p236 = scmp.ne.s32.totalorder %s228, %s230
      %p237 = scmp.eq.s32.totalorder %s26, 1
      %p238 = por %p236, %p237
      %p239 = scmp.ne.s32.totalorder %s230, %s231
      %p240 = scmp.eq.s32.totalorder %s26, 0
      %p241 = por %p239, %p240
      %p242 = scmp.ne.s32.totalorder %s230, %s231
      %p243 = scmp.eq.s32.totalorder %s27, 1
      %p244 = por %p242, %p243
      %p246 = scmp.ne.s32.totalorder %s231, %s245
      %p247 = scmp.eq.s32.totalorder %s27, 0
      %p248 = por %p246, %p247
      %s250 = sadd.s32 %s249, 1
      %p253 = scmp.eq.s32.totalorder %s21, 1
      %p254 = scmp.ne.s32.totalorder %s249, %s251
      %p255 = scmp.eq.s32.totalorder %s21, 0
      %p256 = por %p254, %p255
      %p257 = scmp.ne.s32.totalorder %s249, %s251
      %p258 = scmp.eq.s32.totalorder %s26, 1
      %p259 = por %p257, %p258
      %p260 = scmp.ne.s32.totalorder %s251, %s252
      %p261 = scmp.eq.s32.totalorder %s26, 0
      %p262 = por %p260, %p261
      %p263 = scmp.ne.s32.totalorder %s251, %s252
      %p264 = scmp.eq.s32.totalorder %s27, 1
      %p265 = por %p263, %p264
      %p267 = scmp.ne.s32.totalorder %s252, %s266
      %p268 = scmp.eq.s32.totalorder %s27, 0
      %p269 = por %p267, %p268
      %s271 = sadd.s32 %s270, 1
      %p274 = scmp.eq.s32.totalorder %s21, 1
      %p275 = scmp.ne.s32.totalorder %s270, %s272
      %p276 = scmp.eq.s32.totalorder %s21, 0
      %p277 = por %p275, %p276
      %p278 = scmp.ne.s32.totalorder %s270, %s272
      %p279 = scmp.eq.s32.totalorder %s26, 1
      %p280 = por %p278, %p279
      %p281 = scmp.ne.s32.totalorder %s272, %s273
      %p282 = scmp.eq.s32.totalorder %s26, 0
      %p283 = por %p281, %p282
      %p284 = scmp.ne.s32.totalorder %s272, %s273
      %p285 = scmp.eq.s32.totalorder %s27, 1
      %p286 = por %p284, %p285
      %p288 = scmp.ne.s32.totalorder %s273, %s287
      %p289 = scmp.eq.s32.totalorder %s27, 0
      %p290 = por %p288, %p289
      %p291 = scmp.le.s32.totalorder 1, %s21
      %p292 = scmp.lt.s32.totalorder %s21, 3
      %p293 = pnand %p291, %p292
      %p294 = pneg %p293
      // Predicated region
      $region9: #{tpu_custom_call.1} parent=5 // pred_check
        _
      $region10: #{tpu_custom_call.1} parent=5 // pred_check_branch
        %296 = sbr.rel (%p293) target = $region12
      $region11: #{tpu_custom_call.1} parent=5 // pred_region
        %s297 = ssub.s32 %s21, 1
        // Predicated region
        $region13: #{tpu_custom_call.1} parent=11 // pred_check
          %p298 = pneg %p94
        $region14: #{tpu_custom_call.1} parent=11 // pred_check_branch
          %300 = sbr.rel (%p298) target = $region16
        $region15: #{tpu_custom_call.1} parent=11 // pred_region
          _
        $region16: #{tpu_custom_call.1} parent=11 // pred_fallthru
          _
        // Predicated region
        $region17: #{tpu_custom_call.1} parent=11 // pred_check
          %p301 = pneg %p115
        $region18: #{tpu_custom_call.1} parent=11 // pred_check_branch
          %303 = sbr.rel (%p301) target = $region20
        $region19: #{tpu_custom_call.1} parent=11 // pred_region
          %s305 = ssub.s32 2048, 2048
          %306 = vsyncadd [#allocation4], %s305
          %s307 = sshll.u32 [#allocation3], 4
          %s308 = int_to_ptr.vmem [resolvable:$true] %s307
          %313 = dma.hbm_to_vmem [thread:$0]  %s3, 2048, %s308, [#allocation4], 128, 128, 8
        $region20: #{tpu_custom_call.1} parent=11 // pred_fallthru
          _
        // Predicated region
        $region21: #{tpu_custom_call.1} parent=11 // pred_check
          %p314 = pneg %p136
        $region22: #{tpu_custom_call.1} parent=11 // pred_check_branch
          %316 = sbr.rel (%p314) target = $region24
        $region23: #{tpu_custom_call.1} parent=11 // pred_region
          _
        $region24: #{tpu_custom_call.1} parent=11 // pred_fallthru
          _
        // Predicated region
        $region25: #{tpu_custom_call.1} parent=11 // pred_check
          %p317 = pneg %p157
        $region26: #{tpu_custom_call.1} parent=11 // pred_check_branch
          %319 = sbr.rel (%p317) target = $region28
        $region27: #{tpu_custom_call.1} parent=11 // pred_region
          %s321 = ssub.s32 2048, 2048
          %322 = vsyncadd [#allocation7], %s321
          %s323 = sshll.u32 [#allocation6], 4
          %s324 = int_to_ptr.vmem [resolvable:$true] %s323
          %329 = dma.hbm_to_vmem [thread:$0]  %s5, 2048, %s324, [#allocation7], 128, 128, 8
        $region28: #{tpu_custom_call.1} parent=11 // pred_fallthru
          _
        // Predicated region
        $region29: #{tpu_custom_call.1} parent=11 // pred_check
          %p330 = pneg %p178
        $region30: #{tpu_custom_call.1} parent=11 // pred_check_branch
          %332 = sbr.rel (%p330) target = $region32
        $region31: #{tpu_custom_call.1} parent=11 // pred_region
          _
        $region32: #{tpu_custom_call.1} parent=11 // pred_fallthru
          _
        // Predicated region
        $region33: #{tpu_custom_call.1} parent=11 // pred_check
          %p333 = pneg %p199
        $region34: #{tpu_custom_call.1} parent=11 // pred_check_branch
          %335 = sbr.rel (%p333) target = $region36
        $region35: #{tpu_custom_call.1} parent=11 // pred_region
          %s337 = ssub.s32 2048, 2048
          %338 = vsyncadd [#allocation7], %s337
          %s339 = sshll.u32 [#allocation8], 4
          %s340 = int_to_ptr.vmem [resolvable:$true] %s339
          %345 = dma.hbm_to_vmem [thread:$0]  %s7, 2048, %s340, [#allocation7], 128, 128, 8
        $region36: #{tpu_custom_call.1} parent=11 // pred_fallthru
          _
        // Predicated region
        $region37: #{tpu_custom_call.1} parent=11 // pred_check
          %p346 = pneg %p220
        $region38: #{tpu_custom_call.1} parent=11 // pred_check_branch
          %348 = sbr.rel (%p346) target = $region40
        $region39: #{tpu_custom_call.1} parent=11 // pred_region
          _
        $region40: #{tpu_custom_call.1} parent=11 // pred_fallthru
          _
        // Predicated region
        $region41: #{tpu_custom_call.1} parent=11 // pred_check
          %p349 = pneg %p241
        $region42: #{tpu_custom_call.1} parent=11 // pred_check_branch
          %351 = sbr.rel (%p349) target = $region44
        $region43: #{tpu_custom_call.1} parent=11 // pred_region
          %s353 = ssub.s32 2048, 2048
          %354 = vsyncadd [#allocation10], %s353
          %s355 = sshll.u32 [#allocation9], 4
          %s356 = int_to_ptr.vmem [resolvable:$true] %s355
          %361 = dma.hbm_to_vmem [thread:$0]  %s9, 2048, %s356, [#allocation10], 128, 128, 8
        $region44: #{tpu_custom_call.1} parent=11 // pred_fallthru
          _
        // Predicated region
        $region45: #{tpu_custom_call.1} parent=11 // pred_check
          %p362 = pneg %p262
        $region46: #{tpu_custom_call.1} parent=11 // pred_check_branch
          %364 = sbr.rel (%p362) target = $region48
        $region47: #{tpu_custom_call.1} parent=11 // pred_region
          _
        $region48: #{tpu_custom_call.1} parent=11 // pred_fallthru
          _
      $region12: #{tpu_custom_call.1} parent=5 // pred_fallthru
        _
      %p365 = scmp.lt.s32.totalorder %s21, 2
      // Predicated region
      $region49: #{tpu_custom_call.1} parent=5 // pred_check
        %p366 = pneg %p365
      $region50: #{tpu_custom_call.1} parent=5 // pred_check_branch
        %368 = sbr.rel (%p366) target = $region52
      $region51: #{tpu_custom_call.1} parent=5 // pred_region
        // Predicated region
        $region53: #{tpu_custom_call.1} parent=51 // pred_check
          %p369 = pneg %p41
        $region54: #{tpu_custom_call.1} parent=51 // pred_check_branch
          %371 = sbr.rel (%p369) target = $region56
        $region55: #{tpu_custom_call.1} parent=51 // pred_region
          %s372 = smul.u32 4, %s21
          %p373 = scmp.lt.s32.totalorder %s372, 7
          %s374 = scalar_select %p373, %s372, 7
          %s375 = smul.addr %s374, 8
          %s376 = scalar_lea.vmem %s0, %s375
          %s377 = smul.u32 4, %s21
        $region56: #{tpu_custom_call.1} parent=51 // pred_fallthru
          _
        // Predicated region
        $region57: #{tpu_custom_call.1} parent=51 // pred_check
          %p378 = pneg %p67
        $region58: #{tpu_custom_call.1} parent=51 // pred_check_branch
          %380 = sbr.rel (%p378) target = $region60
        $region59: #{tpu_custom_call.1} parent=51 // pred_region
          %s381 = smul.u32 4, %s21
          %p382 = scmp.lt.s32.totalorder %s381, 7
          %s383 = scalar_select %p382, %s381, 7
          %s384 = smul.addr %s383, 8
          %s385 = scalar_lea.vmem %s1, %s384
          %s386 = smul.u32 4, %s21
        $region60: #{tpu_custom_call.1} parent=51 // pred_fallthru
          _
      $region52: #{tpu_custom_call.1} parent=5 // pred_fallthru
        _
      %p387 = scmp.le.s32.totalorder 1, %s21
      %p388 = scmp.lt.s32.totalorder %s21, 3
      %p389 = pnand %p387, %p388
      %p390 = pneg %p389
      // Predicated region
      $region61: #{tpu_custom_call.1} parent=5 // pred_check
        _
      $region62: #{tpu_custom_call.1} parent=5 // pred_check_branch
        %392 = sbr.rel (%p389) target = $region64
      $region63: #{tpu_custom_call.1} parent=5 // pred_region
        %s393 = ssub.s32 %s21, 1
        // Predicated region
        $region65: #{tpu_custom_call.1} parent=63 // pred_check
          %p394 = pneg %p115
        $region66: #{tpu_custom_call.1} parent=63 // pred_check_branch
          %396 = sbr.rel (%p394) target = $region68
        $region67: #{tpu_custom_call.1} parent=63 // pred_region
          %397 = dma.done [#allocation4], 2048
        $region68: #{tpu_custom_call.1} parent=63 // pred_fallthru
          _
        // Predicated region
        $region69: #{tpu_custom_call.1} parent=63 // pred_check
          %p398 = pneg %p157
        $region70: #{tpu_custom_call.1} parent=63 // pred_check_branch
          %400 = sbr.rel (%p398) target = $region72
        $region71: #{tpu_custom_call.1} parent=63 // pred_region
          %401 = dma.done [#allocation7], 2048
        $region72: #{tpu_custom_call.1} parent=63 // pred_fallthru
          _
        // Predicated region
        $region73: #{tpu_custom_call.1} parent=63 // pred_check
          %p402 = pneg %p199
        $region74: #{tpu_custom_call.1} parent=63 // pred_check_branch
          %404 = sbr.rel (%p402) target = $region76
        $region75: #{tpu_custom_call.1} parent=63 // pred_region
          %405 = dma.done [#allocation7], 2048
        $region76: #{tpu_custom_call.1} parent=63 // pred_fallthru
          _
        // Predicated region
        $region77: #{tpu_custom_call.1} parent=63 // pred_check
          %p406 = pneg %p241
        $region78: #{tpu_custom_call.1} parent=63 // pred_check_branch
          %408 = sbr.rel (%p406) target = $region80
        $region79: #{tpu_custom_call.1} parent=63 // pred_region
          %409 = dma.done [#allocation10], 2048
        $region80: #{tpu_custom_call.1} parent=63 // pred_fallthru
          _
        %s410 = smul.u32 4, %s26
        %p411 = scmp.lt.s32.totalorder %s410, 7
        %s412 = scalar_select %p411, %s410, 7
        %s413 = smul.addr %s412, 8
        %s414 = scalar_lea.vmem %s0, %s413
        %p415 = pneg %p47
        %p416 = pneg %p44
        %s417 = smul.u32 4, %s26
        %p418 = scmp.lt.s32.totalorder %s417, 7
        %s419 = scalar_select %p418, %s417, 7
        %s420 = smul.addr %s419, 8
        %s421 = scalar_lea.vmem %s1, %s420
        %p422 = pneg %p73
        %p423 = pneg %p70
        %p424 = pneg %p94
        %p425 = pneg %p91
        %p426 = pneg %p115
        %p427 = pneg %p112
        %p428 = pneg %p136
        %p429 = pneg %p133
        %p430 = pneg %p157
        %p431 = pneg %p154
        %p432 = pneg %p178
        %p433 = pneg %p175
        %p434 = pneg %p199
        %p435 = pneg %p196
        %p436 = pneg %p220
        %p437 = pneg %p217
        %p438 = pneg %p241
        %p439 = pneg %p238
        %p440 = pneg %p262
        %p441 = pneg %p259
        %p442 = pneg %p283
        %p443 = pneg %p280
        %s444 = smul.u32 4, %s26
        %p445 = scmp.lt.s32.totalorder %s444, 7
        %s446 = scalar_select %p445, %s444, 7
        %s447 = smul.addr %s446, 8
        %s448 = scalar_lea.vmem %s0, %s447
        %s449 = smul.u32 4, %s26
        %s450 = smul.u32 4, %s26
        %p451 = scmp.lt.s32.totalorder %s450, 7
        %s452 = scalar_select %p451, %s450, 7
        %s453 = smul.addr %s452, 8
        %s454 = scalar_lea.vmem %s1, %s453
        %s455 = smul.u32 4, %s26
        %p456 = scmp.eq.s32.totalorder %s26, 0
        // Predicated region
        $region81: #{tpu_custom_call.1} parent=63 // pred_check
          %p457 = pneg %p456
        $region82: #{tpu_custom_call.1} parent=63 // pred_check_branch
          %459 = sbr.rel (%p457) target = $region84
        $region83: #{tpu_custom_call.1} parent=63 // pred_region
          %460 = vst [vmem:[#allocation2] sm:$0xff] 0.0
        $region84: #{tpu_custom_call.1} parent=63 // pred_fallthru
          _
        %v461 = vld [vmem:[%s448] sm:$0xff]
        %v462 = vld [vmem:[%s448 + $0x8] sm:$0xff]
        %v463 = vld [vmem:[%s448 + $0x10] sm:$0xff]
        %v464 = vld [vmem:[%s448 + $0x18] sm:$0xff]
        %v465 = vld [vmem:[#allocation3] sm:$0xff]
        %v466 = vld [vmem:[#allocation3 + $0x8] sm:$0xff]
        %v467 = vld [vmem:[#allocation3 + $0x10] sm:$0xff]
        %v468 = vld [vmem:[#allocation3 + $0x18] sm:$0xff]
        %v469 = vld [vmem:[#allocation3 + $0x20] sm:$0xff]
        %v470 = vld [vmem:[#allocation3 + $0x28] sm:$0xff]
        %v471 = vld [vmem:[#allocation3 + $0x30] sm:$0xff]
        %v472 = vld [vmem:[#allocation3 + $0x38] sm:$0xff]
        %v473 = vld [vmem:[#allocation3 + $0x40] sm:$0xff]
        %v474 = vld [vmem:[#allocation3 + $0x48] sm:$0xff]
        %v475 = vld [vmem:[#allocation3 + $0x50] sm:$0xff]
        %v476 = vld [vmem:[#allocation3 + $0x58] sm:$0xff]
        %v477 = vld [vmem:[#allocation3 + $0x60] sm:$0xff]
        %v478 = vld [vmem:[#allocation3 + $0x68] sm:$0xff]
        %v479 = vld [vmem:[#allocation3 + $0x70] sm:$0xff]
        %v480 = vld [vmem:[#allocation3 + $0x78] sm:$0xff]
        %v481 = vld [vmem:[%s4] sm:$0x1]
        %v483 = vlaneseq
        %v484 = vshrl.u32 %v483, 7
        %v485 = vsub.s32 0, %v484
        %v486 = vrot.slane %v481, %v485
        %488 = vmatprep.subr.mxu0 0.0
        %489 = vmatpush1.msra.mxu0 %v465
        %490 = vmatprep.subr.mxu0 0.0
        %491 = vmatpush1.msra.mxu0 %v466
        %492 = vmatprep.subr.mxu0 0.0
        %493 = vmatpush1.msra.mxu0 %v467
        %494 = vmatprep.subr.mxu0 0.0
        %495 = vmatpush1.msra.mxu0 %v468
        %496 = vmatprep.subr.mxu0 0.0
        %497 = vmatpush1.msra.mxu0 %v469
        %498 = vmatprep.subr.mxu0 0.0
        %499 = vmatpush1.msra.mxu0 %v470
        %500 = vmatprep.subr.mxu0 0.0
        %501 = vmatpush1.msra.mxu0 %v471
        %502 = vmatprep.subr.mxu0 0.0
        %503 = vmatpush1.msra.mxu0 %v472
        %504 = vmatprep.subr.mxu0 0.0
        %505 = vmatpush1.msra.mxu0 %v473
        %506 = vmatprep.subr.mxu0 0.0
        %507 = vmatpush1.msra.mxu0 %v474
        %508 = vmatprep.subr.mxu0 0.0
        %509 = vmatpush1.msra.mxu0 %v475
        %510 = vmatprep.subr.mxu0 0.0
        %511 = vmatpush1.msra.mxu0 %v476
        %512 = vmatprep.subr.mxu0 0.0
        %513 = vmatpush1.msra.mxu0 %v477
        %514 = vmatprep.subr.mxu0 0.0
        %515 = vmatpush1.msra.mxu0 %v478
        %516 = vmatprep.subr.mxu0 0.0
        %517 = vmatpush1.msra.mxu0 %v479
        %518 = vmatprep.subr.mxu0 0.0
        %519 = vmatpush1.msra.mxu0 %v480
        %520 = vmatprep.subr.mxu0 0.0
        %521 = vmatpush1.msra.mxu0 0.0
        %522 = vmatprep.subr.mxu0 0.0
        %523 = vmatpush1.msra.mxu0 0.0
        %524 = vmatprep.subr.mxu0 0.0
        %525 = vmatpush1.msra.mxu0 0.0
        %526 = vmatprep.subr.mxu0 0.0
        %527 = vmatpush1.msra.mxu0 0.0
        %528 = vmatprep.subr.mxu0 0.0
        %529 = vmatpush1.msra.mxu0 0.0
        %530 = vmatprep.subr.mxu0 0.0
        %531 = vmatpush1.msra.mxu0 0.0
        %532 = vmatprep.subr.mxu0 0.0
        %533 = vmatpush1.msra.mxu0 0.0
        %534 = vmatprep.subr.mxu0 0.0
        %535 = vmatpush1.msra.mxu0 0.0
        %536 = vmatprep.subr.mxu0 0.0
        %537 = vmatpush1.msra.mxu0 0.0
        %538 = vmatprep.subr.mxu0 0.0
        %539 = vmatpush1.msra.mxu0 0.0
        %540 = vmatprep.subr.mxu0 0.0
        %541 = vmatpush1.msra.mxu0 0.0
        %542 = vmatprep.subr.mxu0 0.0
        %543 = vmatpush1.msra.mxu0 0.0
        %544 = vmatprep.subr.mxu0 0.0
        %545 = vmatpush1.msra.mxu0 0.0
        %546 = vmatprep.subr.mxu0 0.0
        %547 = vmatpush1.msra.mxu0 0.0
        %548 = vmatprep.subr.mxu0 0.0
        %549 = vmatpush1.msra.mxu0 0.0
        %550 = vmatprep.subr.mxu0 0.0
        %551 = vmatpush1.msra.mxu0 0.0
        %552 = vmatprep.mubr.f32.mxu0 0.0
        %553 = vmatmul.mubr.f32.gmra.mrb[0].mxu0 %v461
        %v554 = vpop.f32.mrb[0].mxu0
        %v555 = vadd.f32 %v486, %v554
        %v556 = vpop.f32.mrb[0].mxu0
        %557 = vmatprep.mubr.f32.mxu0 0.0
        %558 = vmatmul.mubr.f32.gmra.mrb[0].mxu0 %v462
        %v559 = vpop.f32.mrb[0].mxu0
        %v560 = vadd.f32 %v486, %v559
        %v561 = vpop.f32.mrb[0].mxu0
        %562 = vmatprep.mubr.f32.mxu0 0.0
        %563 = vmatmul.mubr.f32.gmra.mrb[0].mxu0 %v463
        %v564 = vpop.f32.mrb[0].mxu0
        %v565 = vadd.f32 %v486, %v564
        %v566 = vpop.f32.mrb[0].mxu0
        %567 = vmatprep.mubr.f32.mxu0 0.0
        %568 = vmatmul.mubr.f32.gmra.mrb[0].mxu0 %v464
        %v569 = vpop.f32.mrb[0].mxu0
        %v570 = vadd.f32 %v486, %v569
        %v571 = vpop.f32.mrb[0].mxu0
        %572 = vdwg.mxu0
        %v573 = vmax.f32 %v555, 0.0
        %v574 = vmax.f32 %v560, 0.0
        %v575 = vmax.f32 %v565, 0.0
        %v576 = vmax.f32 %v570, 0.0
        %v577 = vld [vmem:[#allocation6] sm:$0xff]
        %v578 = vld [vmem:[#allocation6 + $0x8] sm:$0xff]
        %v579 = vld [vmem:[#allocation6 + $0x10] sm:$0xff]
        %v580 = vld [vmem:[#allocation6 + $0x18] sm:$0xff]
        %v581 = vld [vmem:[#allocation6 + $0x20] sm:$0xff]
        %v582 = vld [vmem:[#allocation6 + $0x28] sm:$0xff]
        %v583 = vld [vmem:[#allocation6 + $0x30] sm:$0xff]
        %v584 = vld [vmem:[#allocation6 + $0x38] sm:$0xff]
        %v585 = vld [vmem:[#allocation6 + $0x40] sm:$0xff]
        %v586 = vld [vmem:[#allocation6 + $0x48] sm:$0xff]
        %v587 = vld [vmem:[#allocation6 + $0x50] sm:$0xff]
        %v588 = vld [vmem:[#allocation6 + $0x58] sm:$0xff]
        %v589 = vld [vmem:[#allocation6 + $0x60] sm:$0xff]
        %v590 = vld [vmem:[#allocation6 + $0x68] sm:$0xff]
        %v591 = vld [vmem:[#allocation6 + $0x70] sm:$0xff]
        %v592 = vld [vmem:[#allocation6 + $0x78] sm:$0xff]
        %v593 = vld [vmem:[%s6] sm:$0x1]
        %v595 = vlaneseq
        %v596 = vshrl.u32 %v595, 7
        %v597 = vsub.s32 0, %v596
        %v598 = vrot.slane %v593, %v597
        %600 = vmatprep.subr.mxu0 0.0
        %601 = vmatpush1.msra.mxu0 %v577
        %602 = vmatprep.subr.mxu0 0.0
        %603 = vmatpush1.msra.mxu0 %v578
        %604 = vmatprep.subr.mxu0 0.0
        %605 = vmatpush1.msra.mxu0 %v579
        %606 = vmatprep.subr.mxu0 0.0
        %607 = vmatpush1.msra.mxu0 %v580
        %608 = vmatprep.subr.mxu0 0.0
        %609 = vmatpush1.msra.mxu0 %v581
        %610 = vmatprep.subr.mxu0 0.0
        %611 = vmatpush1.msra.mxu0 %v582
        %612 = vmatprep.subr.mxu0 0.0
        %613 = vmatpush1.msra.mxu0 %v583
        %614 = vmatprep.subr.mxu0 0.0
        %615 = vmatpush1.msra.mxu0 %v584
        %616 = vmatprep.subr.mxu0 0.0
        %617 = vmatpush1.msra.mxu0 %v585
        %618 = vmatprep.subr.mxu0 0.0
        %619 = vmatpush1.msra.mxu0 %v586
        %620 = vmatprep.subr.mxu0 0.0
        %621 = vmatpush1.msra.mxu0 %v587
        %622 = vmatprep.subr.mxu0 0.0
        %623 = vmatpush1.msra.mxu0 %v588
        %624 = vmatprep.subr.mxu0 0.0
        %625 = vmatpush1.msra.mxu0 %v589
        %626 = vmatprep.subr.mxu0 0.0
        %627 = vmatpush1.msra.mxu0 %v590
        %628 = vmatprep.subr.mxu0 0.0
        %629 = vmatpush1.msra.mxu0 %v591
        %630 = vmatprep.subr.mxu0 0.0
        %631 = vmatpush1.msra.mxu0 %v592
        %632 = vmatprep.subr.mxu0 0.0
        %633 = vmatpush1.msra.mxu0 0.0
        %634 = vmatprep.subr.mxu0 0.0
        %635 = vmatpush1.msra.mxu0 0.0
        %636 = vmatprep.subr.mxu0 0.0
        %637 = vmatpush1.msra.mxu0 0.0
        %638 = vmatprep.subr.mxu0 0.0
        %639 = vmatpush1.msra.mxu0 0.0
        %640 = vmatprep.subr.mxu0 0.0
        %641 = vmatpush1.msra.mxu0 0.0
        %642 = vmatprep.subr.mxu0 0.0
        %643 = vmatpush1.msra.mxu0 0.0
        %644 = vmatprep.subr.mxu0 0.0
        %645 = vmatpush1.msra.mxu0 0.0
        %646 = vmatprep.subr.mxu0 0.0
        %647 = vmatpush1.msra.mxu0 0.0
        %648 = vmatprep.subr.mxu0 0.0
        %649 = vmatpush1.msra.mxu0 0.0
        %650 = vmatprep.subr.mxu0 0.0
        %651 = vmatpush1.msra.mxu0 0.0
        %652 = vmatprep.subr.mxu0 0.0
        %653 = vmatpush1.msra.mxu0 0.0
        %654 = vmatprep.subr.mxu0 0.0
        %655 = vmatpush1.msra.mxu0 0.0
        %656 = vmatprep.subr.mxu0 0.0
        %657 = vmatpush1.msra.mxu0 0.0
        %658 = vmatprep.subr.mxu0 0.0
        %659 = vmatpush1.msra.mxu0 0.0
        %660 = vmatprep.subr.mxu0 0.0
        %661 = vmatpush1.msra.mxu0 0.0
        %662 = vmatprep.subr.mxu0 0.0
        %663 = vmatpush1.msra.mxu0 0.0
        %664 = vmatprep.mubr.f32.mxu0 0.0
        %665 = vmatmul.mubr.f32.gmra.mrb[0].mxu0 %v573
        %v666 = vpop.f32.mrb[0].mxu0
        %v667 = vadd.f32 %v598, %v666
        %v668 = vpop.f32.mrb[0].mxu0
        %669 = vmatprep.mubr.f32.mxu0 0.0
        %670 = vmatmul.mubr.f32.gmra.mrb[0].mxu0 %v574
        %v671 = vpop.f32.mrb[0].mxu0
        %v672 = vadd.f32 %v598, %v671
        %v673 = vpop.f32.mrb[0].mxu0
        %674 = vmatprep.mubr.f32.mxu0 0.0
        %675 = vmatmul.mubr.f32.gmra.mrb[0].mxu0 %v575
        %v676 = vpop.f32.mrb[0].mxu0
        %v677 = vadd.f32 %v598, %v676
        %v678 = vpop.f32.mrb[0].mxu0
        %679 = vmatprep.mubr.f32.mxu0 0.0
        %680 = vmatmul.mubr.f32.gmra.mrb[0].mxu0 %v576
        %v681 = vpop.f32.mrb[0].mxu0
        %v682 = vadd.f32 %v598, %v681
        %v683 = vpop.f32.mrb[0].mxu0
        %684 = vdwg.mxu0
        %v685 = vlaneseq
        %v686 = vand.u32 %v685, 127
        %v687 = vld [vmem:[%s454] sm:$0xff]
        %v688 = vld [vmem:[%s454 + $0x8] sm:$0xff]
        %v689 = vld [vmem:[%s454 + $0x10] sm:$0xff]
        %v690 = vld [vmem:[%s454 + $0x18] sm:$0xff]
        %691 = vset.pattern.permute.xlu0 0
        %692 = vperm.xlu0 %691, %v687
        %v693 = vpop.permute.xlu0 %692
        %694 = vset.pattern.permute.xlu0 0
        %695 = vperm.xlu0 %694, %v688
        %v696 = vpop.permute.xlu0 %695
        %697 = vset.pattern.permute.xlu0 0
        %698 = vperm.xlu0 %697, %v689
        %v699 = vpop.permute.xlu0 %698
        %700 = vset.pattern.permute.xlu0 0
        %701 = vperm.xlu0 %700, %v690
        %v702 = vpop.permute.xlu0 %701
        %vm703 = vcmp.eq.s32.totalorder %v693, %v686
        %vm704 = vcmp.eq.s32.totalorder %v696, %v686
        %vm705 = vcmp.eq.s32.totalorder %v699, %v686
        %vm706 = vcmp.eq.s32.totalorder %v702, %v686
        %v707 = vsel %vm703, 1, 0
        %v708 = vsel %vm704, 1, 0
        %v709 = vsel %vm705, 1, 0
        %v710 = vsel %vm706, 1, 0
        %v711 = vcvt.s32.f32 %v707
        %v712 = vcvt.s32.f32 %v708
        %v713 = vcvt.s32.f32 %v709
        %v714 = vcvt.s32.f32 %v710
        %v715 = vld [vmem:[#allocation2] sm:$0xff]
        %716 = vxpose.xlu0.b32.start [1/16] %v711, 128
        %717 = vxpose.xlu0.b32.cont [2/16] %v712, 128
        %718 = vxpose.xlu0.b32.cont [3/16] %v713, 128
        %719 = vxpose.xlu0.b32.cont [4/16] %v714, 128
        %720 = vxpose.xlu0.b32.cont [5/16] 0.0, 128
        %721 = vxpose.xlu0.b32.cont [6/16] 0.0, 128
        %722 = vxpose.xlu0.b32.cont [7/16] 0.0, 128
        %723 = vxpose.xlu0.b32.cont [8/16] 0.0, 128
        %724 = vxpose.xlu0.b32.cont [9/16] 0.0, 128
        %725 = vxpose.xlu0.b32.cont [10/16] 0.0, 128
        %726 = vxpose.xlu0.b32.cont [11/16] 0.0, 128
        %727 = vxpose.xlu0.b32.cont [12/16] 0.0, 128
        %728 = vxpose.xlu0.b32.cont [13/16] 0.0, 128
        %729 = vxpose.xlu0.b32.cont [14/16] 0.0, 128
        %730 = vxpose.xlu0.b32.cont [15/16] 0.0, 128
        %731 = vxpose.xlu0.b32.end [16/16] 0.0, 128
        %v732 = vpop.trf.xlu0
        %v733 = vpop.trf.xlu0
        %v734 = vpop.trf.xlu0
        %v735 = vpop.trf.xlu0
        %v736 = vpop.trf.xlu0
        %v737 = vpop.trf.xlu0
        %v738 = vpop.trf.xlu0
        %v739 = vpop.trf.xlu0
        %v740 = vpop.trf.xlu0
        %v741 = vpop.trf.xlu0
        %v742 = vpop.trf.xlu0
        %v743 = vpop.trf.xlu0
        %v744 = vpop.trf.xlu0
        %v745 = vpop.trf.xlu0
        %v746 = vpop.trf.xlu0
        %v747 = vpop.trf.xlu0
        %vm748 = vcmask 261120
        %v750 = vsel %vm748, %v732, 0
        %752 = vmatprep.subr.mxu0 0.0
        %753 = vmatpush1.msra.mxu0 %v667
        %754 = vmatprep.subr.mxu0 0.0
        %755 = vmatpush1.msra.mxu0 %v672
        %756 = vmatprep.subr.mxu0 0.0
        %757 = vmatpush1.msra.mxu0 %v677
        %758 = vmatprep.subr.mxu0 0.0
        %759 = vmatpush1.msra.mxu0 %v682
        %760 = vmatprep.subr.mxu0 0.0
        %761 = vmatpush1.msra.mxu0 0.0
        %762 = vmatprep.subr.mxu0 0.0
        %763 = vmatpush1.msra.mxu0 0.0
        %764 = vmatprep.subr.mxu0 0.0
        %765 = vmatpush1.msra.mxu0 0.0
        %766 = vmatprep.subr.mxu0 0.0
        %767 = vmatpush1.msra.mxu0 0.0
        %768 = vmatprep.subr.mxu0 0.0
        %769 = vmatpush1.msra.mxu0 0.0
        %770 = vmatprep.subr.mxu0 0.0
        %771 = vmatpush1.msra.mxu0 0.0
        %772 = vmatprep.subr.mxu0 0.0
        %773 = vmatpush1.msra.mxu0 0.0
        %774 = vmatprep.subr.mxu0 0.0
        %775 = vmatpush1.msra.mxu0 0.0
        %776 = vmatprep.subr.mxu0 0.0
        %777 = vmatpush1.msra.mxu0 0.0
        %778 = vmatprep.subr.mxu0 0.0
        %779 = vmatpush1.msra.mxu0 0.0
        %780 = vmatprep.subr.mxu0 0.0
        %781 = vmatpush1.msra.mxu0 0.0
        %782 = vmatprep.subr.mxu0 0.0
        %783 = vmatpush1.msra.mxu0 0.0
        %784 = vmatprep.subr.mxu0 0.0
        %785 = vmatpush1.msra.mxu0 0.0
        %786 = vmatprep.subr.mxu0 0.0
        %787 = vmatpush1.msra.mxu0 0.0
        %788 = vmatprep.subr.mxu0 0.0
        %789 = vmatpush1.msra.mxu0 0.0
        %790 = vmatprep.subr.mxu0 0.0
        %791 = vmatpush1.msra.mxu0 0.0
        %792 = vmatprep.subr.mxu0 0.0
        %793 = vmatpush1.msra.mxu0 0.0
        %794 = vmatprep.subr.mxu0 0.0
        %795 = vmatpush1.msra.mxu0 0.0
        %796 = vmatprep.subr.mxu0 0.0
        %797 = vmatpush1.msra.mxu0 0.0
        %798 = vmatprep.subr.mxu0 0.0
        %799 = vmatpush1.msra.mxu0 0.0
        %800 = vmatprep.subr.mxu0 0.0
        %801 = vmatpush1.msra.mxu0 0.0
        %802 = vmatprep.subr.mxu0 0.0
        %803 = vmatpush1.msra.mxu0 0.0
        %804 = vmatprep.subr.mxu0 0.0
        %805 = vmatpush1.msra.mxu0 0.0
        %806 = vmatprep.subr.mxu0 0.0
        %807 = vmatpush1.msra.mxu0 0.0
        %808 = vmatprep.subr.mxu0 0.0
        %809 = vmatpush1.msra.mxu0 0.0
        %810 = vmatprep.subr.mxu0 0.0
        %811 = vmatpush1.msra.mxu0 0.0
        %812 = vmatprep.subr.mxu0 0.0
        %813 = vmatpush1.msra.mxu0 0.0
        %814 = vmatprep.subr.mxu0 0.0
        %815 = vmatpush1.msra.mxu0 0.0
        %816 = vmatprep.mubr.f32.mxu0 0.0
        %817 = vmatmul.mubr.f32.gmra.mrb[0].mxu0 %v750
        %v818 = vpop.f32.mrb[0].mxu0
        %v819 = vadd.f32 0.0, %v818
        %v820 = vpop.f32.mrb[0].mxu0
        %821 = vdwg.mxu0
        %v822 = vadd.f32 %v715, %v819
        %823 = vst [vmem:[#allocation2] sm:$0xff] %v822
        %p824 = scmp.eq.s32.totalorder %s26, 1
        // Predicated region
        $region85: #{tpu_custom_call.1} parent=63 // pred_check
          %p825 = pneg %p824
        $region86: #{tpu_custom_call.1} parent=63 // pred_check_branch
          %827 = sbr.rel (%p825) target = $region88
        $region87: #{tpu_custom_call.1} parent=63 // pred_region
          %v828 = vld [vmem:[#allocation2] sm:$0xff]
          %v829 = vld [vmem:[%s2] sm:$0xff]
          %831 = vset.pattern.permute.xlu0 0
          %832 = vperm.xlu0 %831, %v829
          %v833 = vpop.permute.xlu0 %832
          %v835 = vmul.f32 %v828, %v833
          %v836 = vld [vmem:[#allocation8] sm:$0xff]
          %v837 = vld [vmem:[#allocation8 + $0x8] sm:$0xff]
          %v838 = vld [vmem:[#allocation8 + $0x10] sm:$0xff]
          %v839 = vld [vmem:[#allocation8 + $0x18] sm:$0xff]
          %v840 = vld [vmem:[#allocation8 + $0x20] sm:$0xff]
          %v841 = vld [vmem:[#allocation8 + $0x28] sm:$0xff]
          %v842 = vld [vmem:[#allocation8 + $0x30] sm:$0xff]
          %v843 = vld [vmem:[#allocation8 + $0x38] sm:$0xff]
          %v844 = vld [vmem:[#allocation8 + $0x40] sm:$0xff]
          %v845 = vld [vmem:[#allocation8 + $0x48] sm:$0xff]
          %v846 = vld [vmem:[#allocation8 + $0x50] sm:$0xff]
          %v847 = vld [vmem:[#allocation8 + $0x58] sm:$0xff]
          %v848 = vld [vmem:[#allocation8 + $0x60] sm:$0xff]
          %v849 = vld [vmem:[#allocation8 + $0x68] sm:$0xff]
          %v850 = vld [vmem:[#allocation8 + $0x70] sm:$0xff]
          %v851 = vld [vmem:[#allocation8 + $0x78] sm:$0xff]
          %v852 = vld [vmem:[%s8] sm:$0x1]
          %v854 = vlaneseq
          %v855 = vshrl.u32 %v854, 7
          %v856 = vsub.s32 0, %v855
          %v857 = vrot.slane %v852, %v856
          %859 = vmatprep.subr.mxu0 0.0
          %860 = vmatpush1.msra.mxu0 %v836
          %861 = vmatprep.subr.mxu0 0.0
          %862 = vmatpush1.msra.mxu0 %v837
          %863 = vmatprep.subr.mxu0 0.0
          %864 = vmatpush1.msra.mxu0 %v838
          %865 = vmatprep.subr.mxu0 0.0
          %866 = vmatpush1.msra.mxu0 %v839
          %867 = vmatprep.subr.mxu0 0.0
          %868 = vmatpush1.msra.mxu0 %v840
          %869 = vmatprep.subr.mxu0 0.0
          %870 = vmatpush1.msra.mxu0 %v841
          %871 = vmatprep.subr.mxu0 0.0
          %872 = vmatpush1.msra.mxu0 %v842
          %873 = vmatprep.subr.mxu0 0.0
          %874 = vmatpush1.msra.mxu0 %v843
          %875 = vmatprep.subr.mxu0 0.0
          %876 = vmatpush1.msra.mxu0 %v844
          %877 = vmatprep.subr.mxu0 0.0
          %878 = vmatpush1.msra.mxu0 %v845
          %879 = vmatprep.subr.mxu0 0.0
          %880 = vmatpush1.msra.mxu0 %v846
          %881 = vmatprep.subr.mxu0 0.0
          %882 = vmatpush1.msra.mxu0 %v847
          %883 = vmatprep.subr.mxu0 0.0
          %884 = vmatpush1.msra.mxu0 %v848
          %885 = vmatprep.subr.mxu0 0.0
          %886 = vmatpush1.msra.mxu0 %v849
          %887 = vmatprep.subr.mxu0 0.0
          %888 = vmatpush1.msra.mxu0 %v850
          %889 = vmatprep.subr.mxu0 0.0
          %890 = vmatpush1.msra.mxu0 %v851
          %891 = vmatprep.subr.mxu0 0.0
          %892 = vmatpush1.msra.mxu0 0.0
          %893 = vmatprep.subr.mxu0 0.0
          %894 = vmatpush1.msra.mxu0 0.0
          %895 = vmatprep.subr.mxu0 0.0
          %896 = vmatpush1.msra.mxu0 0.0
          %897 = vmatprep.subr.mxu0 0.0
          %898 = vmatpush1.msra.mxu0 0.0
          %899 = vmatprep.subr.mxu0 0.0
          %900 = vmatpush1.msra.mxu0 0.0
          %901 = vmatprep.subr.mxu0 0.0
          %902 = vmatpush1.msra.mxu0 0.0
          %903 = vmatprep.subr.mxu0 0.0
          %904 = vmatpush1.msra.mxu0 0.0
          %905 = vmatprep.subr.mxu0 0.0
          %906 = vmatpush1.msra.mxu0 0.0
          %907 = vmatprep.subr.mxu0 0.0
          %908 = vmatpush1.msra.mxu0 0.0
          %909 = vmatprep.subr.mxu0 0.0
          %910 = vmatpush1.msra.mxu0 0.0
          %911 = vmatprep.subr.mxu0 0.0
          %912 = vmatpush1.msra.mxu0 0.0
          %913 = vmatprep.subr.mxu0 0.0
          %914 = vmatpush1.msra.mxu0 0.0
          %915 = vmatprep.subr.mxu0 0.0
          %916 = vmatpush1.msra.mxu0 0.0
          %917 = vmatprep.subr.mxu0 0.0
          %918 = vmatpush1.msra.mxu0 0.0
          %919 = vmatprep.subr.mxu0 0.0
          %920 = vmatpush1.msra.mxu0 0.0
          %921 = vmatprep.subr.mxu0 0.0
          %922 = vmatpush1.msra.mxu0 0.0
          %923 = vmatprep.mubr.f32.mxu0 0.0
          %924 = vmatmul.mubr.f32.gmra.mrb[0].mxu0 %v835
          %v925 = vpop.f32.mrb[0].mxu0
          %v926 = vadd.f32 %v857, %v925
          %v927 = vpop.f32.mrb[0].mxu0
          %928 = vdwg.mxu0
          %v929 = vmax.f32 %v926, 0.0
          %v930 = vld [vmem:[#allocation9] sm:$0xff]
          %v931 = vld [vmem:[#allocation9 + $0x8] sm:$0xff]
          %v932 = vld [vmem:[#allocation9 + $0x10] sm:$0xff]
          %v933 = vld [vmem:[#allocation9 + $0x18] sm:$0xff]
          %v934 = vld [vmem:[#allocation9 + $0x20] sm:$0xff]
          %v935 = vld [vmem:[#allocation9 + $0x28] sm:$0xff]
          %v936 = vld [vmem:[#allocation9 + $0x30] sm:$0xff]
          %v937 = vld [vmem:[#allocation9 + $0x38] sm:$0xff]
          %v938 = vld [vmem:[#allocation9 + $0x40] sm:$0xff]
          %v939 = vld [vmem:[#allocation9 + $0x48] sm:$0xff]
          %v940 = vld [vmem:[#allocation9 + $0x50] sm:$0xff]
          %v941 = vld [vmem:[#allocation9 + $0x58] sm:$0xff]
          %v942 = vld [vmem:[#allocation9 + $0x60] sm:$0xff]
          %v943 = vld [vmem:[#allocation9 + $0x68] sm:$0xff]
          %v944 = vld [vmem:[#allocation9 + $0x70] sm:$0xff]
          %v945 = vld [vmem:[#allocation9 + $0x78] sm:$0xff]
          %v946 = vld [vmem:[%s10] sm:$0x1]
          %v948 = vlaneseq
          %v949 = vshrl.u32 %v948, 7
          %v950 = vsub.s32 0, %v949
          %v951 = vrot.slane %v946, %v950
          %953 = vmatprep.subr.mxu0 0.0
          %954 = vmatpush1.msra.mxu0 %v930
          %955 = vmatprep.subr.mxu0 0.0
          %956 = vmatpush1.msra.mxu0 %v931
          %957 = vmatprep.subr.mxu0 0.0
          %958 = vmatpush1.msra.mxu0 %v932
          %959 = vmatprep.subr.mxu0 0.0
          %960 = vmatpush1.msra.mxu0 %v933
          %961 = vmatprep.subr.mxu0 0.0
          %962 = vmatpush1.msra.mxu0 %v934
          %963 = vmatprep.subr.mxu0 0.0
          %964 = vmatpush1.msra.mxu0 %v935
          %965 = vmatprep.subr.mxu0 0.0
          %966 = vmatpush1.msra.mxu0 %v936
          %967 = vmatprep.subr.mxu0 0.0
          %968 = vmatpush1.msra.mxu0 %v937
          %969 = vmatprep.subr.mxu0 0.0
          %970 = vmatpush1.msra.mxu0 %v938
          %971 = vmatprep.subr.mxu0 0.0
          %972 = vmatpush1.msra.mxu0 %v939
          %973 = vmatprep.subr.mxu0 0.0
          %974 = vmatpush1.msra.mxu0 %v940
          %975 = vmatprep.subr.mxu0 0.0
          %976 = vmatpush1.msra.mxu0 %v941
          %977 = vmatprep.subr.mxu0 0.0
          %978 = vmatpush1.msra.mxu0 %v942
          %979 = vmatprep.subr.mxu0 0.0
          %980 = vmatpush1.msra.mxu0 %v943
          %981 = vmatprep.subr.mxu0 0.0
          %982 = vmatpush1.msra.mxu0 %v944
          %983 = vmatprep.subr.mxu0 0.0
          %984 = vmatpush1.msra.mxu0 %v945
          %985 = vmatprep.subr.mxu0 0.0
          %986 = vmatpush1.msra.mxu0 0.0
          %987 = vmatprep.subr.mxu0 0.0
          %988 = vmatpush1.msra.mxu0 0.0
          %989 = vmatprep.subr.mxu0 0.0
          %990 = vmatpush1.msra.mxu0 0.0
          %991 = vmatprep.subr.mxu0 0.0
          %992 = vmatpush1.msra.mxu0 0.0
          %993 = vmatprep.subr.mxu0 0.0
          %994 = vmatpush1.msra.mxu0 0.0
          %995 = vmatprep.subr.mxu0 0.0
          %996 = vmatpush1.msra.mxu0 0.0
          %997 = vmatprep.subr.mxu0 0.0
          %998 = vmatpush1.msra.mxu0 0.0
          %999 = vmatprep.subr.mxu0 0.0
          %1000 = vmatpush1.msra.mxu0 0.0
          %1001 = vmatprep.subr.mxu0 0.0
          %1002 = vmatpush1.msra.mxu0 0.0
          %1003 = vmatprep.subr.mxu0 0.0
          %1004 = vmatpush1.msra.mxu0 0.0
          %1005 = vmatprep.subr.mxu0 0.0
          %1006 = vmatpush1.msra.mxu0 0.0
          %1007 = vmatprep.subr.mxu0 0.0
          %1008 = vmatpush1.msra.mxu0 0.0
          %1009 = vmatprep.subr.mxu0 0.0
          %1010 = vmatpush1.msra.mxu0 0.0
          %1011 = vmatprep.subr.mxu0 0.0
          %1012 = vmatpush1.msra.mxu0 0.0
          %1013 = vmatprep.subr.mxu0 0.0
          %1014 = vmatpush1.msra.mxu0 0.0
          %1015 = vmatprep.subr.mxu0 0.0
          %1016 = vmatpush1.msra.mxu0 0.0
          %1017 = vmatprep.mubr.f32.mxu0 0.0
          %1018 = vmatmul.mubr.f32.gmra.mrb[0].mxu0 %v929
          %v1019 = vpop.f32.mrb[0].mxu0
          %v1020 = vadd.f32 %v951, %v1019
          %v1021 = vpop.f32.mrb[0].mxu0
          %1022 = vdwg.mxu0
          %1023 = vst [vmem:[#allocation11] sm:$0xff] %v1020
        $region88: #{tpu_custom_call.1} parent=63 // pred_fallthru
          _
        // Predicated region
        $region89: #{tpu_custom_call.1} parent=63 // pred_check
          %p1024 = pneg %p280
        $region90: #{tpu_custom_call.1} parent=63 // pred_check_branch
          %1026 = sbr.rel (%p1024) target = $region92
        $region91: #{tpu_custom_call.1} parent=63 // pred_region
          %s1028 = ssub.s32 128, 128
          %1029 = vsyncadd [#allocation5], %s1028
          %s1031 = sshll.u32 [#allocation11], 4
          %s1032 = int_to_ptr.vmem [resolvable:$true] %s1031
          %1034 = dma.vmem_to_hbm [thread:$0]  %s1032, 128, %s11, [#allocation5]
        $region92: #{tpu_custom_call.1} parent=63 // pred_fallthru
          _
        // Predicated region
        $region93: #{tpu_custom_call.1} parent=63 // pred_check
          %p1035 = pneg %p280
        $region94: #{tpu_custom_call.1} parent=63 // pred_check_branch
          %1037 = sbr.rel (%p1035) target = $region96
        $region95: #{tpu_custom_call.1} parent=63 // pred_region
          %1038 = dma.done [#allocation5], 128
        $region96: #{tpu_custom_call.1} parent=63 // pred_fallthru
          _
      $region64: #{tpu_custom_call.1} parent=5 // pred_fallthru
        _
      %p1039 = scmp.le.s32.totalorder 2, %s21
      // Predicated region
      $region97: #{tpu_custom_call.1} parent=5 // pred_check
        %p1040 = pneg %p1039
      $region98: #{tpu_custom_call.1} parent=5 // pred_check_branch
        %1042 = sbr.rel (%p1040) target = $region100
      $region99: #{tpu_custom_call.1} parent=5 // pred_region
        %s1043 = ssub.s32 %s21, 2
      $region100: #{tpu_custom_call.1} parent=5 // pred_fallthru
        _
    $region6: #{tpu_custom_call.1} parent=1 // loop_footer
      %s25 = sadd.s32 1, %s21
    $region7: #{tpu_custom_call.1} parent=1 // loop_footer_branch
      %20 = sbr.rel target = $region3
    $region8: #{tpu_custom_call.1} parent=1 // loop_exit
      _
    %1044 = vsyncpa [#allocation4], 1
    %s1045 = scalar_lea.sflag [#allocation4], 1
    %1046 = vsyncpa %s1045, 1
    %1047 = vsyncpa [#allocation7], 1
    %1048 = vsyncpa [#allocation10], 1
    %1049 = vsyncpa [#allocation5], 1
    %s1050 = scalar_lea.sflag [#allocation5], 1
    %1051 = vsyncpa %s1050, 1

</llo_original>
